<compile_context>
chip_gen: v5e
topology: v5e:2x2
jax: 0.10.0
libtpu: 0.0.40
codegen_flags: <defaults>
</compile_context>

<pallas_src>
import jax
import jax.numpy as jnp
import numpy as np
from jax.experimental import pallas as pl
from jax.experimental.pallas import tpu as pltpu


def _round_up(x, m):
    return ((x + m - 1) // m) * m


def _cdiv(a, b):
    return -(-a // b)


# --------------------------------------------------------------------------- #
# Kernel
# --------------------------------------------------------------------------- #
def sbnet_kernel(x_ref, w1_ref, t1_ref, w2_ref, t2_ref, w3_ref, b3_ref,
                 feats_ref, logits_ref):
    # bf16 cast in-kernel (free VPU op) — x arrives in its native f32.
    x = x_ref[...].astype(jnp.bfloat16)

    # fc1: Linear (BN scale pre-folded into weights) + per-channel shift + ReLU.
    h1 = jnp.dot(x, w1_ref[...], preferred_element_type=jnp.float32)
    h1 = jnp.maximum(h1 + t1_ref[...], 0.0)

    # fc2: Linear (BN scale pre-folded) + shift + ReLU.
    h2 = jnp.dot(h1.astype(jnp.bfloat16), w2_ref[...],
                 preferred_element_type=jnp.float32)
    h2 = jnp.maximum(h2 + t2_ref[...], 0.0)

    # Logits matmul on the un-normalized h2; per-row L2 normalization commutes
    # with the matmul, so the reduce/rsqrt/scale stay off the MXU critical path.
    z = jnp.dot(h2.astype(jnp.bfloat16), w3_ref[...],
                preferred_element_type=jnp.float32)

    # L2 normalize: rsqrt(max(||h2||^2, 1e-24)) == 1 / max(||h2||, 1e-12),
    # matching torch.nn.functional.normalize (eval-mode) exactly.
    sq = jnp.sum(h2 * h2, axis=-1, keepdims=True)
    inv = jax.lax.rsqrt(jnp.maximum(sq, 1e-24))

    feats_ref[...] = (h2 * inv).astype(feats_ref.dtype)
    logits_ref[...] = (z * inv + b3_ref[...]).astype(logits_ref.dtype)


# --------------------------------------------------------------------------- #
# One-time parameter preparation (fold BN, pad to lane-dense widths, cast bf16)
# --------------------------------------------------------------------------- #
def prepare_params(params):
    """Call once; reuse the result for every forward call."""
    F, E = params["w1"].shape
    C = params["w3"].shape[1]
    E_pad = _round_up(E, 128)
    C_pad = _round_up(C, 128)

    w1 = jnp.pad((params["w1"] * params["s1"]).astype(jnp.bfloat16),
                 ((0, 0), (0, E_pad - E)))
    t1 = jnp.pad(params["t1"].astype(jnp.float32), ((0, 0), (0, E_pad - E)))
    w2 = jnp.pad((params["w2"] * params["s2"]).astype(jnp.bfloat16),
                 ((0, E_pad - E), (0, E_pad - E)))
    t2 = jnp.pad(params["t2"].astype(jnp.float32), ((0, 0), (0, E_pad - E)))
    w3 = jnp.pad(params["w3"].astype(jnp.bfloat16),
                 ((0, E_pad - E), (0, C_pad - C)))
    b3 = jnp.pad(params["b3"].astype(jnp.float32), ((0, 0), (0, C_pad - C)))

    return dict(w1=w1, t1=t1, w2=w2, t2=t2, w3=w3, b3=b3,
                feat_dim=F, emb_dim=E, n_class=C, emb_pad=E_pad, cls_pad=C_pad)


def _pick_tile(N, tile_m):
    """Row-tile choice: >=2 grid steps (keeps both v7x TCs busy via the
    'parallel' batch axis) and bounded tail-padding waste.  Granularity 16 keeps
    the bf16 output blocks sublane-pack aligned (and is a multiple of 8 for f32)."""
    gran = 16
    n_tiles = max(2, _cdiv(N, tile_m))
    return max(_round_up(_cdiv(N, n_tiles), gran), gran)


# --------------------------------------------------------------------------- #
# Forward wrapper
# --------------------------------------------------------------------------- #
def sbnet_forward(x, prep, *, tile_m=256, out_dtype=jnp.bfloat16,
                  strip_padding=True):
    """x: (N, feat_dim) float32.  prep: output of prepare_params()."""
    N, F = x.shape
    assert F == prep["feat_dim"]
    E, C = prep["emb_dim"], prep["n_class"]
    E_pad, C_pad = prep["emb_pad"], prep["cls_pad"]

    tile = _pick_tile(N, tile_m)
    N_pad = _round_up(N, tile)
    x_p = x if N_pad == N else jnp.pad(x, ((0, N_pad - N), (0, 0)))  # stays f32
    grid = (N_pad // tile,)

    # Resident weights (constant index_map) never change across grid steps, so
    # double-buffering them only doubles VMEM.  Single-buffer them once they are
    # big enough to matter (v7x: 64 MiB physical; v5e: 16 MiB default scoped).
    weight_bytes = (prep["w1"].size + prep["w2"].size + prep["w3"].size) * 2
    w_mode = pl.Buffered(1) if weight_bytes > (4 << 20) else None

    def rep(shape):
        # Full-array block + constant index_map: same block every step, so the
        # DMA is hoisted out of the steady-state pipeline.
        return pl.BlockSpec(shape, lambda i: (0,) * len(shape),
                            pipeline_mode=w_mode)

    out_bytes = jnp.dtype(out_dtype).itemsize
    shift_bytes = (prep["t1"].size + prep["t2"].size + prep["b3"].size) * 4

    # Scoped-VMEM estimate; raise the limit only when the defaults would be hit
    # (large embedding dims), otherwise keep the compiler defaults.
    vmem_est = (weight_bytes * (1 if w_mode is not None else 2)
                + shift_bytes * 2
                + tile * F * 4 * 2                        # x blocks (f32, 2-buf)
                + tile * (E_pad + C_pad) * out_bytes * 2  # output blocks (2-buf)
                + tile * E_pad * 4 * 4)                   # f32 intermediates slack
    compiler_kwargs = dict(dimension_semantics=("parallel",))
    if vmem_est > (12 << 20):
        compiler_kwargs["vmem_limit_bytes"] = min(int(vmem_est * 1.5), 64 << 20)

    flops = 2 * N_pad * (F * E_pad + E_pad * E_pad + E_pad * C_pad)
    bytes_accessed = (N_pad * F * 4 + weight_bytes + shift_bytes
                      + N_pad * (E_pad + C_pad) * out_bytes)
    cost = pl.CostEstimate(flops=flops, transcendentals=N_pad,
                           bytes_accessed=bytes_accessed)

    feats_p, logits_p = pl.pallas_call(
        sbnet_kernel,
        out_shape=(
            jax.ShapeDtypeStruct((N_pad, E_pad), out_dtype),
            jax.ShapeDtypeStruct((N_pad, C_pad), out_dtype),
        ),
        grid_spec=pltpu.PrefetchScalarGridSpec(
            num_scalar_prefetch=0,
            grid=grid,
            in_specs=[
                pl.BlockSpec((tile, F), lambda i: (i, 0)),   # x tile (f32)
                rep((F, E_pad)),                             # w1 * bn1_scale (bf16)
                rep((1, E_pad)),                             # bn1 shift (f32)
                rep((E_pad, E_pad)),                         # w2 * bn2_scale (bf16)
                rep((1, E_pad)),                             # bn2 shift (f32)
                rep((E_pad, C_pad)),                         # w3 (bf16)
                rep((1, C_pad)),                             # b3 (f32)
            ],
            out_specs=[
                pl.BlockSpec((tile, E_pad), lambda i: (i, 0)),   # feats (lane-dense)
                pl.BlockSpec((tile, C_pad), lambda i: (i, 0)),   # logits (lane-dense)
            ],
        ),
        compiler_params=pltpu.CompilerParams(**compiler_kwargs),
        cost_estimate=cost,
    )(x_p, prep["w1"], prep["t1"], prep["w2"], prep["t2"],
      prep["w3"], prep["b3"])

    if strip_padding and (N_pad != N or E_pad != E or C_pad != C):
        # Only copies when padding actually exists; downstream consumers that
        # accept lane-padded outputs should pass strip_padding=False.
        return feats_p[:N, :E], logits_p[:N, :C]
    return feats_p, logits_p


# --------------------------------------------------------------------------- #
# Synthetic parameters + pure-JAX reference
# --------------------------------------------------------------------------- #
def init_params(key, feat_dim, embedding_dim, n_class, eps=1e-5):
    """Deterministic synthetic parameters; BatchNorm1d (eval, running stats) is
    folded with the preceding Linear bias into a per-channel (scale, shift)."""
    ks = jax.random.split(key, 12)

    def linear(kw, kb, fin, fout):
        bound = 1.0 / np.sqrt(fin)
        w = jax.random.uniform(kw, (fin, fout), jnp.float32, -bound, bound)
        b = jax.random.uniform(kb, (fout,), jnp.float32, -bound, bound)
        return w, b

    def bn_fold(kg, kb, km, kv, lin_bias, dim):
        gamma = 1.0 + 0.1 * jax.random.normal(kg, (dim,), jnp.float32)
        beta = 0.1 * jax.random.normal(kb, (dim,), jnp.float32)
        mean = 0.1 * jax.random.normal(km, (dim,), jnp.float32)
        var = jax.nn.softplus(jax.random.normal(kv, (dim,), jnp.float32)) + 0.5
        scale = gamma / jnp.sqrt(var + eps)
        shift = (lin_bias - mean) * scale + beta
        return scale.reshape(1, dim), shift.reshape(1, dim)

    w1, b1 = linear(ks[0], ks[1], feat_dim, embedding_dim)
    s1, t1 = bn_fold(ks[2], ks[3], ks[4], ks[5], b1, embedding_dim)
    w2, b2 = linear(ks[6], ks[7], embedding_dim, embedding_dim)
    s2, t2 = bn_fold(ks[8], ks[9], ks[10], ks[11], b2, embedding_dim)
    kw3, kb3 = jax.random.split(jax.random.fold_in(key, 99))
    w3, b3 = linear(kw3, kb3, embedding_dim, n_class)
    return dict(w1=w1, s1=s1, t1=t1, w2=w2, s2=s2, t2=t2,
                w3=w3, b3=b3.reshape(1, n_class))


def sbnet_reference(x, p):
    """Plain-JAX f32 reference of the same (eval-mode) forward."""
    h1 = jnp.maximum(x @ p["w1"] * p["s1"] + p["t1"], 0.0)
    h2 = jnp.maximum(h1 @ p["w2"] * p["s2"] + p["t2"], 0.0)
    norm = jnp.sqrt(jnp.sum(h2 * h2, axis=-1, keepdims=True))
    feats = h2 / jnp.maximum(norm, 1e-12)
    logits = feats @ p["w3"] + p["b3"]
    return feats, logits


if __name__ == "__main__":
    N, FEAT_DIM, EMB_DIM, N_CLASS = 32, 32, 64, 8

    key = jax.random.PRNGKey(0)
    kx, kp = jax.random.split(key)
    x = jax.random.normal(kx, (N, FEAT_DIM), jnp.float32)
    params = init_params(kp, FEAT_DIM, EMB_DIM, N_CLASS)

    prep = prepare_params(params)            # one-time fold / pad / cast
    feats, logits = sbnet_forward(x, prep)
    feats = jax.block_until_ready(feats)
    logits = jax.block_until_ready(logits)

    # bf16 MXU operands (f32 accumulation) + bf16 outputs => compare to the
    # exact f32 reference with bf16-appropriate tolerances.
    feats_ref, logits_ref = sbnet_reference(x, params)
    np.testing.assert_allclose(np.asarray(feats.astype(jnp.float32)),
                               np.asarray(feats_ref), rtol=2e-2, atol=2e-2)
    np.testing.assert_allclose(np.asarray(logits.astype(jnp.float32)),
                               np.asarray(logits_ref), rtol=2e-2, atol=2e-2)

    # TODO(synk): training-mode BatchNorm (batch statistics) and Dropout masking
    # are not implemented; this kernel reproduces eval/inference semantics.
    print("KERNEL_OK")
</pallas_src>

<mosaic_0001>
module attributes {stable_mosaic.version = 11 : i64} {
  func.func @sbnet_kernel(%arg0: i32, %arg1: memref<16x32xf32, #tpu.memory_space<vmem>>, %arg2: memref<32x128xbf16, #tpu.memory_space<vmem>>, %arg3: memref<1x128xf32, #tpu.memory_space<vmem>>, %arg4: memref<128x128xbf16, #tpu.memory_space<vmem>>, %arg5: memref<1x128xf32, #tpu.memory_space<vmem>>, %arg6: memref<128x128xbf16, #tpu.memory_space<vmem>>, %arg7: memref<1x128xf32, #tpu.memory_space<vmem>>, %arg8: memref<16x128xbf16, #tpu.memory_space<vmem>>, %arg9: memref<16x128xbf16, #tpu.memory_space<vmem>>) attributes {dimension_semantics = [#tpu.dimension_semantics<parallel>], iteration_bounds = array<i64: 2>, scalar_prefetch = 0 : i64, scratch_operands = 0 : i64, tpu.core_type = #tpu.core_type<tc>, window_params = [{transform_indices = @transform_0, window_bounds = array<i64: 16, 32>}, {pipeline_mode = #tpu.pipeline_mode<synchronous>, transform_indices = @transform_1, window_bounds = array<i64: 32, 128>}, {pipeline_mode = #tpu.pipeline_mode<synchronous>, transform_indices = @transform_2, window_bounds = array<i64: 1, 128>}, {pipeline_mode = #tpu.pipeline_mode<synchronous>, transform_indices = @transform_3, window_bounds = array<i64: 128, 128>}, {pipeline_mode = #tpu.pipeline_mode<synchronous>, transform_indices = @transform_4, window_bounds = array<i64: 1, 128>}, {pipeline_mode = #tpu.pipeline_mode<synchronous>, transform_indices = @transform_5, window_bounds = array<i64: 128, 128>}, {pipeline_mode = #tpu.pipeline_mode<synchronous>, transform_indices = @transform_6, window_bounds = array<i64: 1, 128>}, {transform_indices = @transform_7, window_bounds = array<i64: 16, 128>}, {transform_indices = @transform_8, window_bounds = array<i64: 16, 128>}]} {
    %c0 = arith.constant 0 : index
    %c0_0 = arith.constant 0 : index
    %0 = vector.load %arg1[%c0, %c0_0] : memref<16x32xf32, #tpu.memory_space<vmem>>, vector<16x32xf32>
    %1 = arith.truncf %0 : vector<16x32xf32> to vector<16x32xbf16>
    %c0_1 = arith.constant 0 : index
    %c0_2 = arith.constant 0 : index
    %2 = vector.load %arg2[%c0_1, %c0_2] : memref<32x128xbf16, #tpu.memory_space<vmem>>, vector<32x128xbf16>
    %cst = arith.constant dense<0.000000e+00> : vector<16x128xf32>
    %3 = tpu.matmul %1, %2, %cst {dimension_numbers = #tpu.dot_dimension_numbers<[1], [0], [0], [1], [0, 0, 1, 1], [], []>} : vector<16x32xbf16>, vector<32x128xbf16>, vector<16x128xf32> -> vector<16x128xf32>
    %c0_3 = arith.constant 0 : index
    %c0_4 = arith.constant 0 : index
    %4 = vector.load %arg3[%c0_3, %c0_4] : memref<1x128xf32, #tpu.memory_space<vmem>>, vector<1x128xf32>
    %5 = vector.broadcast %4 : vector<1x128xf32> to vector<16x128xf32>
    %6 = arith.addf %3, %5 : vector<16x128xf32>
    %cst_5 = arith.constant 0.000000e+00 : f32
    %7 = vector.broadcast %cst_5 : f32 to vector<16x128xf32>
    %8 = arith.maximumf %6, %7 : vector<16x128xf32>
    %9 = arith.truncf %8 : vector<16x128xf32> to vector<16x128xbf16>
    %c0_6 = arith.constant 0 : index
    %c0_7 = arith.constant 0 : index
    %10 = vector.load %arg4[%c0_6, %c0_7] : memref<128x128xbf16, #tpu.memory_space<vmem>>, vector<128x128xbf16>
    %cst_8 = arith.constant dense<0.000000e+00> : vector<16x128xf32>
    %11 = tpu.matmul %9, %10, %cst_8 {dimension_numbers = #tpu.dot_dimension_numbers<[1], [0], [0], [1], [0, 0, 1, 1], [], []>} : vector<16x128xbf16>, vector<128x128xbf16>, vector<16x128xf32> -> vector<16x128xf32>
    %c0_9 = arith.constant 0 : index
    %c0_10 = arith.constant 0 : index
    %12 = vector.load %arg5[%c0_9, %c0_10] : memref<1x128xf32, #tpu.memory_space<vmem>>, vector<1x128xf32>
    %13 = vector.broadcast %12 : vector<1x128xf32> to vector<16x128xf32>
    %14 = arith.addf %11, %13 : vector<16x128xf32>
    %cst_11 = arith.constant 0.000000e+00 : f32
    %15 = vector.broadcast %cst_11 : f32 to vector<16x128xf32>
    %16 = arith.maximumf %14, %15 : vector<16x128xf32>
    %17 = arith.truncf %16 : vector<16x128xf32> to vector<16x128xbf16>
    %c0_12 = arith.constant 0 : index
    %c0_13 = arith.constant 0 : index
    %18 = vector.load %arg6[%c0_12, %c0_13] : memref<128x128xbf16, #tpu.memory_space<vmem>>, vector<128x128xbf16>
    %cst_14 = arith.constant dense<0.000000e+00> : vector<16x128xf32>
    %19 = tpu.matmul %17, %18, %cst_14 {dimension_numbers = #tpu.dot_dimension_numbers<[1], [0], [0], [1], [0, 0, 1, 1], [], []>} : vector<16x128xbf16>, vector<128x128xbf16>, vector<16x128xf32> -> vector<16x128xf32>
    %20 = arith.mulf %16, %16 : vector<16x128xf32>
    %cst_15 = arith.constant dense<0.000000e+00> : vector<16xf32>
    %21 = vector.multi_reduction <add>, %20, %cst_15 [1] : vector<16x128xf32> to vector<16xf32>
    %22 = vector.shape_cast %21 : vector<16xf32> to vector<16x1xf32>
    %cst_16 = arith.constant 1.000000e-24 : f32
    %23 = vector.broadcast %cst_16 : f32 to vector<16x1xf32>
    %24 = arith.maximumf %22, %23 : vector<16x1xf32>
    %25 = math.rsqrt %24 : vector<16x1xf32>
    %26 = vector.broadcast %25 : vector<16x1xf32> to vector<16x128xf32>
    %27 = arith.mulf %16, %26 : vector<16x128xf32>
    %28 = arith.truncf %27 : vector<16x128xf32> to vector<16x128xbf16>
    %c0_17 = arith.constant 0 : index
    %c0_18 = arith.constant 0 : index
    %29 = vector.load %arg8[%c0_17, %c0_18] : memref<16x128xbf16, #tpu.memory_space<vmem>>, vector<16x128xbf16>
    tpu.vector_store %arg8[%c0_17, %c0_18], %28 {strides = array<i32>} : memref<16x128xbf16, #tpu.memory_space<vmem>>, vector<16x128xbf16>,
    %30 = vector.broadcast %25 : vector<16x1xf32> to vector<16x128xf32>
    %31 = arith.mulf %19, %30 : vector<16x128xf32>
    %c0_19 = arith.constant 0 : index
    %c0_20 = arith.constant 0 : index
    %32 = vector.load %arg7[%c0_19, %c0_20] : memref<1x128xf32, #tpu.memory_space<vmem>>, vector<1x128xf32>
    %33 = vector.broadcast %32 : vector<1x128xf32> to vector<16x128xf32>
    %34 = arith.addf %31, %33 : vector<16x128xf32>
    %35 = arith.truncf %34 : vector<16x128xf32> to vector<16x128xbf16>
    %c0_21 = arith.constant 0 : index
    %c0_22 = arith.constant 0 : index
    %36 = vector.load %arg9[%c0_21, %c0_22] : memref<16x128xbf16, #tpu.memory_space<vmem>>, vector<16x128xbf16>
    tpu.vector_store %arg9[%c0_21, %c0_22], %35 {strides = array<i32>} : memref<16x128xbf16, #tpu.memory_space<vmem>>, vector<16x128xbf16>,
    return
  }
  func.func @transform_0(%arg0: i32) -> (i32, i32) {
    %c0_i32 = arith.constant 0 : i32
    %c0_i32_0 = arith.constant 0 : i32
    return %arg0, %c0_i32 : i32, i32
  }
  func.func @transform_1(%arg0: i32) -> (i32, i32) {
    %c0_i32 = arith.constant 0 : i32
    %c0_i32_0 = arith.constant 0 : i32
    %c0_i32_1 = arith.constant 0 : i32
    return %c0_i32, %c0_i32_0 : i32, i32
  }
  func.func @transform_2(%arg0: i32) -> (i32, i32) {
    %c0_i32 = arith.constant 0 : i32
    %c0_i32_0 = arith.constant 0 : i32
    %c0_i32_1 = arith.constant 0 : i32
    return %c0_i32, %c0_i32_0 : i32, i32
  }
  func.func @transform_3(%arg0: i32) -> (i32, i32) {
    %c0_i32 = arith.constant 0 : i32
    %c0_i32_0 = arith.constant 0 : i32
    %c0_i32_1 = arith.constant 0 : i32
    return %c0_i32, %c0_i32_0 : i32, i32
  }
  func.func @transform_4(%arg0: i32) -> (i32, i32) {
    %c0_i32 = arith.constant 0 : i32
    %c0_i32_0 = arith.constant 0 : i32
    %c0_i32_1 = arith.constant 0 : i32
    return %c0_i32, %c0_i32_0 : i32, i32
  }
  func.func @transform_5(%arg0: i32) -> (i32, i32) {
    %c0_i32 = arith.constant 0 : i32
    %c0_i32_0 = arith.constant 0 : i32
    %c0_i32_1 = arith.constant 0 : i32
    return %c0_i32, %c0_i32_0 : i32, i32
  }
  func.func @transform_6(%arg0: i32) -> (i32, i32) {
    %c0_i32 = arith.constant 0 : i32
    %c0_i32_0 = arith.constant 0 : i32
    %c0_i32_1 = arith.constant 0 : i32
    return %c0_i32, %c0_i32_0 : i32, i32
  }
  func.func @transform_7(%arg0: i32) -> (i32, i32) {
    %c0_i32 = arith.constant 0 : i32
    %c0_i32_0 = arith.constant 0 : i32
    return %arg0, %c0_i32 : i32, i32
  }
  func.func @transform_8(%arg0: i32) -> (i32, i32) {
    %c0_i32 = arith.constant 0 : i32
    %c0_i32_0 = arith.constant 0 : i32
    return %arg0, %c0_i32 : i32, i32
  }
}

</mosaic_0001>

<llo_original>
// kernel: tpu_custom_call.1
$region0: #{tpu_custom_call.1}
  #allocation0 [shape = 'u32[]', space=smem, size = 0x4, offset = 0x4, fixed_abs, tag = 'smem constant byte address 0x4 - core index']
  #allocation1 [shape = 'u32[72,128]{1,0:T(1,128)}', space=vmem, size = 0x9000, scoped, tag = 'internal scratch']
  %s0 = inlined_call_operand.hbm [shape: f32[32,32], index: 0, kind: input, shape index: {}]
  %s1 = inlined_call_operand.hbm [shape: bf16[32,128], index: 1, kind: input, shape index: {}]
  %s2 = inlined_call_operand.vmem [shape: f32[1,128], index: 2, kind: input, shape index: {}]
  %s3 = inlined_call_operand.hbm [shape: bf16[128,128], index: 3, kind: input, shape index: {}]
  %s4 = inlined_call_operand.vmem [shape: f32[1,128], index: 4, kind: input, shape index: {}]
  %s5 = inlined_call_operand.hbm [shape: bf16[128,128], index: 5, kind: input, shape index: {}]
  %s6 = inlined_call_operand.vmem [shape: f32[1,128], index: 6, kind: input, shape index: {}]
  %s7 = inlined_call_operand.hbm [shape: bf16[32,128], index: 7, kind: output, shape index: {0}]
  %s8 = inlined_call_operand.hbm [shape: bf16[32,128], index: 8, kind: output, shape index: {1}]
  %9 = xla_tuple %s7, %s8
  %s10 = sld [smem:[#allocation0]]
  $region85: #{tpu_custom_call.1} parent=0
    _
  %s12 = ssub.s32 1, %s10
  %s13 = scalar_select 0, %s12, %s10
  $region1: #{tpu_custom_call.1} parent=0
    #allocation2 [shape = 'u8[16384]{0}', space=vmem, size = 0x4000, scoped, tag = 'input window, operand 0']
    #allocation3 [shape = 's32[2]{0}', space=sflag, size = 0x8, scoped, tag = 'scoped memory for tpu_custom_call.1']
    #allocation4 [shape = 's32[2]{0}', space=sflag, size = 0x8, scoped, tag = 'scoped memory for tpu_custom_call.1']
    #allocation5 [shape = 'u8[8192]{0}', space=vmem, size = 0x2000, scoped, tag = 'input window, operand 1, single buffered']
    #allocation6 [shape = 's32[1]{0}', space=sflag, size = 0x4, scoped, tag = 'scoped memory for tpu_custom_call.1']
    #allocation7 [shape = 'u8[32768]{0}', space=vmem, size = 0x8000, scoped, tag = 'input window, operand 3, single buffered']
    #allocation8 [shape = 'u8[32768]{0}', space=vmem, size = 0x8000, scoped, tag = 'input window, operand 5, single buffered']
    #allocation9 [shape = 's32[1]{0}', space=sflag, size = 0x4, scoped, tag = 'scoped memory for tpu_custom_call.1']
    #allocation10 [shape = 'u8[8192]{0}', space=vmem, size = 0x2000, scoped, tag = 'output window, operand 0']
    #allocation11 [shape = 'u8[8192]{0}', space=vmem, size = 0x2000, scoped, tag = 'output window, operand 1']
    #allocation12 [shape = 's32[2]{0}', space=sflag, size = 0x8, scoped, tag = 'scoped memory for tpu_custom_call.1']
    %14 = vsyncpa [#allocation3], 0
    %s15 = scalar_lea.sflag [#allocation3], 1
    %16 = vsyncpa %s15, 0
    %17 = vsyncpa [#allocation6], 0
    %18 = vsyncpa [#allocation9], 0
    %19 = vsyncpa [#allocation4], 0
    %s20 = scalar_lea.sflag [#allocation4], 1
    %21 = vsyncpa %s20, 0
    %22 = vsyncpa [#allocation12], 0
    %s23 = scalar_lea.sflag [#allocation12], 1
    %24 = vsyncpa %s23, 0
    loop: start=0, step=1, limit=4
    $region2: #{tpu_custom_call.1} parent=1 // loop_pre_header
      _
    $region3: #{tpu_custom_call.1} parent=1 // loop_header
      %s26 = sphi 0, %s30
      %p27 = scmp.ge.s32.totalorder %s26, 4
      %s36 = sphi 0, %s38
      %s39 = sphi 0, %s36
      %s40 = sphi 0, %s39
      %s56 = sphi 0, %s40
      %s60 = sphi 0, %s60
      %s62 = sphi 0, %s60
      %s63 = sphi 0, %s62
      %s77 = sphi 0, %s63
      %s81 = sphi 0, %s81
      %s83 = sphi 0, %s81
      %s84 = sphi 0, %s83
      %s98 = sphi 0, %s84
      %s102 = sphi 0, %s102
      %s104 = sphi 0, %s102
      %s105 = sphi 0, %s104
      %s119 = sphi 0, %s105
      %s123 = sphi 0, %s123
      %s125 = sphi 0, %s123
      %s126 = sphi 0, %s125
      %s140 = sphi 0, %s126
      %s144 = sphi 0, %s144
      %s146 = sphi 0, %s144
      %s147 = sphi 0, %s146
      %s161 = sphi 0, %s147
      %s165 = sphi 0, %s165
      %s167 = sphi 0, %s165
      %s168 = sphi 0, %s167
      %s182 = sphi 0, %s168
      %s188 = sphi 0, %s190
      %s191 = sphi 0, %s188
      %s192 = sphi 0, %s191
      %s208 = sphi 0, %s192
      %s214 = sphi 0, %s216
      %s217 = sphi 0, %s214
      %s218 = sphi 0, %s217
      %s234 = sphi 0, %s218
    $region4: #{tpu_custom_call.1} parent=1 // loop_header_branch
      %29 = sbr.rel (%p27) target = $region8
    $region5: #{tpu_custom_call.1} parent=1 // loop_body
      %s31 = ssub.s32 %s26, 1
      %s32 = ssub.s32 %s26, 2
      %s33 = sadd.s32 %s26, 1
      %s34 = ssub.s32 %s26, %s33
      %p35 = scmp.eq.s32.totalorder %s34, 0
      %s37 = sadd.s32 %s36, 1
      %s38 = scalar_select %p35, %s36, %s37
      %p41 = pneg %p35
      %p42 = scmp.eq.s32.totalorder %s26, 1
      %p43 = por %p41, %p42
      %p44 = scmp.ne.s32.totalorder %s36, %s39
      %p45 = scmp.eq.s32.totalorder %s26, 0
      %p46 = por %p44, %p45
      %p47 = scmp.ne.s32.totalorder %s36, %s39
      %p48 = scmp.eq.s32.totalorder %s31, 1
      %p49 = por %p47, %p48
      %p50 = scmp.ne.s32.totalorder %s39, %s40
      %p51 = scmp.eq.s32.totalorder %s31, 0
      %p52 = por %p50, %p51
      %p53 = scmp.ne.s32.totalorder %s39, %s40
      %p54 = scmp.eq.s32.totalorder %s32, 1
      %p55 = por %p53, %p54
      %p57 = scmp.ne.s32.totalorder %s40, %s56
      %p58 = scmp.eq.s32.totalorder %s32, 0
      %p59 = por %p57, %p58
      %s61 = sadd.s32 %s60, 1
      %p64 = scmp.eq.s32.totalorder %s26, 1
      %p65 = scmp.ne.s32.totalorder %s60, %s62
      %p66 = scmp.eq.s32.totalorder %s26, 0
      %p67 = por %p65, %p66
      %p68 = scmp.ne.s32.totalorder %s60, %s62
      %p69 = scmp.eq.s32.totalorder %s31, 1
      %p70 = por %p68, %p69
      %p71 = scmp.ne.s32.totalorder %s62, %s63
      %p72 = scmp.eq.s32.totalorder %s31, 0
      %p73 = por %p71, %p72
      %p74 = scmp.ne.s32.totalorder %s62, %s63
      %p75 = scmp.eq.s32.totalorder %s32, 1
      %p76 = por %p74, %p75
      %p78 = scmp.ne.s32.totalorder %s63, %s77
      %p79 = scmp.eq.s32.totalorder %s32, 0
      %p80 = por %p78, %p79
      %s82 = sadd.s32 %s81, 1
      %p85 = scmp.eq.s32.totalorder %s26, 1
      %p86 = scmp.ne.s32.totalorder %s81, %s83
      %p87 = scmp.eq.s32.totalorder %s26, 0
      %p88 = por %p86, %p87
      %p89 = scmp.ne.s32.totalorder %s81, %s83
      %p90 = scmp.eq.s32.totalorder %s31, 1
      %p91 = por %p89, %p90
      %p92 = scmp.ne.s32.totalorder %s83, %s84
      %p93 = scmp.eq.s32.totalorder %s31, 0
      %p94 = por %p92, %p93
      %p95 = scmp.ne.s32.totalorder %s83, %s84
      %p96 = scmp.eq.s32.totalorder %s32, 1
      %p97 = por %p95, %p96
      %p99 = scmp.ne.s32.totalorder %s84, %s98
      %p100 = scmp.eq.s32.totalorder %s32, 0
      %p101 = por %p99, %p100
      %s103 = sadd.s32 %s102, 1
      %p106 = scmp.eq.s32.totalorder %s26, 1
      %p107 = scmp.ne.s32.totalorder %s102, %s104
      %p108 = scmp.eq.s32.totalorder %s26, 0
      %p109 = por %p107, %p108
      %p110 = scmp.ne.s32.totalorder %s102, %s104
      %p111 = scmp.eq.s32.totalorder %s31, 1
      %p112 = por %p110, %p111
      %p113 = scmp.ne.s32.totalorder %s104, %s105
      %p114 = scmp.eq.s32.totalorder %s31, 0
      %p115 = por %p113, %p114
      %p116 = scmp.ne.s32.totalorder %s104, %s105
      %p117 = scmp.eq.s32.totalorder %s32, 1
      %p118 = por %p116, %p117
      %p120 = scmp.ne.s32.totalorder %s105, %s119
      %p121 = scmp.eq.s32.totalorder %s32, 0
      %p122 = por %p120, %p121
      %s124 = sadd.s32 %s123, 1
      %p127 = scmp.eq.s32.totalorder %s26, 1
      %p128 = scmp.ne.s32.totalorder %s123, %s125
      %p129 = scmp.eq.s32.totalorder %s26, 0
      %p130 = por %p128, %p129
      %p131 = scmp.ne.s32.totalorder %s123, %s125
      %p132 = scmp.eq.s32.totalorder %s31, 1
      %p133 = por %p131, %p132
      %p134 = scmp.ne.s32.totalorder %s125, %s126
      %p135 = scmp.eq.s32.totalorder %s31, 0
      %p136 = por %p134, %p135
      %p137 = scmp.ne.s32.totalorder %s125, %s126
      %p138 = scmp.eq.s32.totalorder %s32, 1
      %p139 = por %p137, %p138
      %p141 = scmp.ne.s32.totalorder %s126, %s140
      %p142 = scmp.eq.s32.totalorder %s32, 0
      %p143 = por %p141, %p142
      %s145 = sadd.s32 %s144, 1
      %p148 = scmp.eq.s32.totalorder %s26, 1
      %p149 = scmp.ne.s32.totalorder %s144, %s146
      %p150 = scmp.eq.s32.totalorder %s26, 0
      %p151 = por %p149, %p150
      %p152 = scmp.ne.s32.totalorder %s144, %s146
      %p153 = scmp.eq.s32.totalorder %s31, 1
      %p154 = por %p152, %p153
      %p155 = scmp.ne.s32.totalorder %s146, %s147
      %p156 = scmp.eq.s32.totalorder %s31, 0
      %p157 = por %p155, %p156
      %p158 = scmp.ne.s32.totalorder %s146, %s147
      %p159 = scmp.eq.s32.totalorder %s32, 1
      %p160 = por %p158, %p159
      %p162 = scmp.ne.s32.totalorder %s147, %s161
      %p163 = scmp.eq.s32.totalorder %s32, 0
      %p164 = por %p162, %p163
      %s166 = sadd.s32 %s165, 1
      %p169 = scmp.eq.s32.totalorder %s26, 1
      %p170 = scmp.ne.s32.totalorder %s165, %s167
      %p171 = scmp.eq.s32.totalorder %s26, 0
      %p172 = por %p170, %p171
      %p173 = scmp.ne.s32.totalorder %s165, %s167
      %p174 = scmp.eq.s32.totalorder %s31, 1
      %p175 = por %p173, %p174
      %p176 = scmp.ne.s32.totalorder %s167, %s168
      %p177 = scmp.eq.s32.totalorder %s31, 0
      %p178 = por %p176, %p177
      %p179 = scmp.ne.s32.totalorder %s167, %s168
      %p180 = scmp.eq.s32.totalorder %s32, 1
      %p181 = por %p179, %p180
      %p183 = scmp.ne.s32.totalorder %s168, %s182
      %p184 = scmp.eq.s32.totalorder %s32, 0
      %p185 = por %p183, %p184
      %s186 = ssub.s32 %s26, %s33
      %p187 = scmp.eq.s32.totalorder %s186, 0
      %s189 = sadd.s32 %s188, 1
      %s190 = scalar_select %p187, %s188, %s189
      %p193 = pneg %p187
      %p194 = scmp.eq.s32.totalorder %s26, 1
      %p195 = por %p193, %p194
      %p196 = scmp.ne.s32.totalorder %s188, %s191
      %p197 = scmp.eq.s32.totalorder %s26, 0
      %p198 = por %p196, %p197
      %p199 = scmp.ne.s32.totalorder %s188, %s191
      %p200 = scmp.eq.s32.totalorder %s31, 1
      %p201 = por %p199, %p200
      %p202 = scmp.ne.s32.totalorder %s191, %s192
      %p203 = scmp.eq.s32.totalorder %s31, 0
      %p204 = por %p202, %p203
      %p205 = scmp.ne.s32.totalorder %s191, %s192
      %p206 = scmp.eq.s32.totalorder %s32, 1
      %p207 = por %p205, %p206
      %p209 = scmp.ne.s32.totalorder %s192, %s208
      %p210 = scmp.eq.s32.totalorder %s32, 0
      %p211 = por %p209, %p210
      %s212 = ssub.s32 %s26, %s33
      %p213 = scmp.eq.s32.totalorder %s212, 0
      %s215 = sadd.s32 %s214, 1
      %s216 = scalar_select %p213, %s214, %s215
      %p219 = pneg %p213
      %p220 = scmp.eq.s32.totalorder %s26, 1
      %p221 = por %p219, %p220
      %p222 = scmp.ne.s32.totalorder %s214, %s217
      %p223 = scmp.eq.s32.totalorder %s26, 0
      %p224 = por %p222, %p223
      %p225 = scmp.ne.s32.totalorder %s214, %s217
      %p226 = scmp.eq.s32.totalorder %s31, 1
      %p227 = por %p225, %p226
      %p228 = scmp.ne.s32.totalorder %s217, %s218
      %p229 = scmp.eq.s32.totalorder %s31, 0
      %p230 = por %p228, %p229
      %p231 = scmp.ne.s32.totalorder %s217, %s218
      %p232 = scmp.eq.s32.totalorder %s32, 1
      %p233 = por %p231, %p232
      %p235 = scmp.ne.s32.totalorder %s218, %s234
      %p236 = scmp.eq.s32.totalorder %s32, 0
      %p237 = por %p235, %p236
      %p238 = scmp.le.s32.totalorder 1, %s26
      %p239 = scmp.lt.s32.totalorder %s26, 3
      %p240 = pnand %p238, %p239
      %p241 = pneg %p240
      // Predicated region
      $region9: #{tpu_custom_call.1} parent=5 // pred_check
        _
      $region10: #{tpu_custom_call.1} parent=5 // pred_check_branch
        %243 = sbr.rel (%p240) target = $region12
      $region11: #{tpu_custom_call.1} parent=5 // pred_region
        %s244 = ssub.s32 %s26, 1
        // Predicated region
        $region13: #{tpu_custom_call.1} parent=11 // pred_check
          %p245 = pneg %p73
        $region14: #{tpu_custom_call.1} parent=11 // pred_check_branch
          %247 = sbr.rel (%p245) target = $region16
        $region15: #{tpu_custom_call.1} parent=11 // pred_region
          %249 = vsyncadd [#allocation6], 0
          %s250 = sshll.u32 %s1, 4
          %s251 = int_to_ptr.hbm [resolvable:$true] %s250
          %s252 = sshll.u32 [#allocation5], 4
          %s253 = int_to_ptr.vmem [resolvable:$true] %s252
          %258 = dma.hbm_to_vmem [thread:$0]  %s251, 256, %s253, [#allocation6], 64, 64, 4
        $region16: #{tpu_custom_call.1} parent=11 // pred_fallthru
          _
        // Predicated region
        $region17: #{tpu_custom_call.1} parent=11 // pred_check
          %p259 = pneg %p94
        $region18: #{tpu_custom_call.1} parent=11 // pred_check_branch
          %261 = sbr.rel (%p259) target = $region20
        $region19: #{tpu_custom_call.1} parent=11 // pred_region
          _
        $region20: #{tpu_custom_call.1} parent=11 // pred_fallthru
          _
        // Predicated region
        $region21: #{tpu_custom_call.1} parent=11 // pred_check
          %p262 = pneg %p115
        $region22: #{tpu_custom_call.1} parent=11 // pred_check_branch
          %264 = sbr.rel (%p262) target = $region24
        $region23: #{tpu_custom_call.1} parent=11 // pred_region
          %266 = vsyncadd [#allocation6], 0
          %s267 = sshll.u32 %s3, 4
          %s268 = int_to_ptr.hbm [resolvable:$true] %s267
          %s269 = sshll.u32 [#allocation7], 4
          %s270 = int_to_ptr.vmem [resolvable:$true] %s269
          %275 = dma.hbm_to_vmem [thread:$0]  %s268, 1024, %s270, [#allocation6], 64, 64, 4
        $region24: #{tpu_custom_call.1} parent=11 // pred_fallthru
          _
        // Predicated region
        $region25: #{tpu_custom_call.1} parent=11 // pred_check
          %p276 = pneg %p136
        $region26: #{tpu_custom_call.1} parent=11 // pred_check_branch
          %278 = sbr.rel (%p276) target = $region28
        $region27: #{tpu_custom_call.1} parent=11 // pred_region
          _
        $region28: #{tpu_custom_call.1} parent=11 // pred_fallthru
          _
        // Predicated region
        $region29: #{tpu_custom_call.1} parent=11 // pred_check
          %p279 = pneg %p157
        $region30: #{tpu_custom_call.1} parent=11 // pred_check_branch
          %281 = sbr.rel (%p279) target = $region32
        $region31: #{tpu_custom_call.1} parent=11 // pred_region
          %283 = vsyncadd [#allocation9], 0
          %s284 = sshll.u32 %s5, 4
          %s285 = int_to_ptr.hbm [resolvable:$true] %s284
          %s286 = sshll.u32 [#allocation8], 4
          %s287 = int_to_ptr.vmem [resolvable:$true] %s286
          %292 = dma.hbm_to_vmem [thread:$0]  %s285, 1024, %s287, [#allocation9], 64, 64, 4
        $region32: #{tpu_custom_call.1} parent=11 // pred_fallthru
          _
        // Predicated region
        $region33: #{tpu_custom_call.1} parent=11 // pred_check
          %p293 = pneg %p178
        $region34: #{tpu_custom_call.1} parent=11 // pred_check_branch
          %295 = sbr.rel (%p293) target = $region36
        $region35: #{tpu_custom_call.1} parent=11 // pred_region
          _
        $region36: #{tpu_custom_call.1} parent=11 // pred_fallthru
          _
      $region12: #{tpu_custom_call.1} parent=5 // pred_fallthru
        _
      %p296 = scmp.lt.s32.totalorder %s26, 2
      // Predicated region
      $region37: #{tpu_custom_call.1} parent=5 // pred_check
        %p297 = pneg %p296
      $region38: #{tpu_custom_call.1} parent=5 // pred_check_branch
        %299 = sbr.rel (%p297) target = $region40
      $region39: #{tpu_custom_call.1} parent=5 // pred_region
        // Predicated region
        $region41: #{tpu_custom_call.1} parent=39 // pred_check
          %p300 = pneg %p46
        $region42: #{tpu_custom_call.1} parent=39 // pred_check_branch
          %302 = sbr.rel (%p300) target = $region44
        $region43: #{tpu_custom_call.1} parent=39 // pred_region
          %s303 = sand.u32 %s36, 1
          %s304 = scalar_lea.sflag [#allocation3], %s303
          %s305 = sand.u32 %s36, 1
          %s306 = smul.addr %s305, 16
          %s307 = scalar_lea.vmem [#allocation2], %s306
          %s308 = smul.u32 2, %s26
          %310 = vsyncadd %s304, 0
          %s311 = smul.addr %s308, 8
          %s312 = scalar_lea.hbm %s0, %s311
          %s313 = sshll.u32 %s312, 4
          %s314 = int_to_ptr.hbm [resolvable:$true] %s313
          %s315 = sshll.u32 %s307, 4
          %s316 = int_to_ptr.vmem [resolvable:$true] %s315
          %321 = dma.hbm_to_vmem [thread:$0]  %s314, 256, %s316, %s304, 128, 128, 8
        $region44: #{tpu_custom_call.1} parent=39 // pred_fallthru
          _
      $region40: #{tpu_custom_call.1} parent=5 // pred_fallthru
        _
      %p322 = scmp.le.s32.totalorder 1, %s26
      %p323 = scmp.lt.s32.totalorder %s26, 3
      %p324 = pnand %p322, %p323
      %p325 = pneg %p324
      // Predicated region
      $region45: #{tpu_custom_call.1} parent=5 // pred_check
        _
      $region46: #{tpu_custom_call.1} parent=5 // pred_check_branch
        %327 = sbr.rel (%p324) target = $region48
      $region47: #{tpu_custom_call.1} parent=5 // pred_region
        %s328 = ssub.s32 %s26, 1
        %s329 = sand.u32 %s39, 1
        %s330 = scalar_lea.sflag [#allocation3], %s329
        %s331 = sand.u32 %s39, 1
        %s332 = smul.addr %s331, 16
        %s333 = scalar_lea.vmem [#allocation2], %s332
        // Predicated region
        $region49: #{tpu_custom_call.1} parent=47 // pred_check
          %p334 = pneg %p52
        $region50: #{tpu_custom_call.1} parent=47 // pred_check_branch
          %336 = sbr.rel (%p334) target = $region52
        $region51: #{tpu_custom_call.1} parent=47 // pred_region
          %338 = dma.done %s330, 256
        $region52: #{tpu_custom_call.1} parent=47 // pred_fallthru
          _
        // Predicated region
        $region53: #{tpu_custom_call.1} parent=47 // pred_check
          %p339 = pneg %p73
        $region54: #{tpu_custom_call.1} parent=47 // pred_check_branch
          %341 = sbr.rel (%p339) target = $region56
        $region55: #{tpu_custom_call.1} parent=47 // pred_region
          %343 = dma.done [#allocation6], 256
        $region56: #{tpu_custom_call.1} parent=47 // pred_fallthru
          _
        // Predicated region
        $region57: #{tpu_custom_call.1} parent=47 // pred_check
          %p344 = pneg %p115
        $region58: #{tpu_custom_call.1} parent=47 // pred_check_branch
          %346 = sbr.rel (%p344) target = $region60
        $region59: #{tpu_custom_call.1} parent=47 // pred_region
          %348 = dma.done [#allocation6], 1024
        $region60: #{tpu_custom_call.1} parent=47 // pred_fallthru
          _
        // Predicated region
        $region61: #{tpu_custom_call.1} parent=47 // pred_check
          %p349 = pneg %p157
        $region62: #{tpu_custom_call.1} parent=47 // pred_check_branch
          %351 = sbr.rel (%p349) target = $region64
        $region63: #{tpu_custom_call.1} parent=47 // pred_region
          %353 = dma.done [#allocation9], 1024
        $region64: #{tpu_custom_call.1} parent=47 // pred_fallthru
          _
        %s354 = sand.u32 %s39, 1
        %s355 = scalar_lea.sflag [#allocation3], %s354
        %s356 = sand.u32 %s39, 1
        %s357 = smul.addr %s356, 16
        %s358 = scalar_lea.vmem [#allocation2], %s357
        %p359 = pneg %p52
        %p360 = pneg %p49
        %p361 = pneg %p73
        %p362 = pneg %p70
        %p363 = pneg %p94
        %p364 = pneg %p91
        %p365 = pneg %p115
        %p366 = pneg %p112
        %p367 = pneg %p136
        %p368 = pneg %p133
        %p369 = pneg %p157
        %p370 = pneg %p154
        %p371 = pneg %p178
        %p372 = pneg %p175
        %p373 = pneg %p204
        %p374 = pneg %p201
        %s375 = sand.u32 %s191, 1
        %s376 = scalar_lea.sflag [#allocation4], %s375
        %s377 = sand.u32 %s191, 1
        %s378 = smul.addr %s377, 8
        %s379 = scalar_lea.vmem [#allocation10], %s378
        %p380 = pneg %p230
        %p381 = pneg %p227
        %s382 = sand.u32 %s217, 1
        %s383 = scalar_lea.sflag [#allocation12], %s382
        %s384 = sand.u32 %s217, 1
        %s385 = smul.addr %s384, 8
        %s386 = scalar_lea.vmem [#allocation11], %s385
        %s387 = smul.u32 2, %s31
        %s388 = smul.u32 2, %s31
        %s389 = smul.u32 2, %s31
        %v391 = vld [vmem:[%s333] sm:$0xff]
        %v392 = vld [vmem:[%s333 + $0x8] sm:$0xff]
        %v393 = vpack.c.bf16 %v392, %v391
        %v394 = vld [vmem:[#allocation5] sm:$0xf]
        %v395 = vld [vmem:[#allocation5 + $0x4] sm:$0xf]
        %v396 = vld [vmem:[#allocation5 + $0x8] sm:$0xf]
        %v397 = vld [vmem:[#allocation5 + $0xc] sm:$0xf]
        %v398 = vld [vmem:[%s2] sm:$0x1]
        %v400 = vperm.slane %v398, 0
        %v406 = vunpack.c.l.b16 %v394
        %v407 = vunpack.c.l.b16 %v395
        %v408 = vunpack.c.l.b16 %v396
        %v409 = vunpack.c.l.b16 %v397
        %v410 = vpack.c.b16 %v407, %v406
        %v411 = vpack.c.b16 %v409, %v408
        %vm414 = vcmask 261120
        %v416 = vsel %vm414, %v393, 0
        %418 = vmatpush.bf16.msra.mxu0 0
        %419 = vmatpush.bf16.msra.mxu0 0
        %420 = vmatpush.bf16.msra.mxu0 0
        %421 = vmatpush.bf16.msra.mxu0 0
        %422 = vmatpush.bf16.msra.mxu0 0
        %423 = vmatpush.bf16.msra.mxu0 0
        %424 = vmatpush.bf16.msra.mxu0 %v411
        %425 = vmatpush.bf16.msra.mxu0 %v410
        %426 = vmatmul.bf16.gmra.mxu0 %v416
        %v427 = vpop.f32.mrf.mxu0
        %v428 = vadd.f32 %v400, %v427
        %v429 = vpop.f32.mrf.mxu0
        %v430 = vadd.f32 %v400, %v429
        %431 = vdwg.mxu0
        %v432 = vmax.f32 %v428, 0.0
        %v433 = vmax.f32 %v430, 0.0
        %v434 = vpack.c.bf16 %v433, %v432
        %v435 = vld [vmem:[#allocation7] sm:$0xf]
        %v436 = vld [vmem:[#allocation7 + $0x4] sm:$0xf]
        %v437 = vld [vmem:[#allocation7 + $0x8] sm:$0xf]
        %v438 = vld [vmem:[#allocation7 + $0xc] sm:$0xf]
        %v439 = vld [vmem:[#allocation7 + $0x10] sm:$0xf]
        %v440 = vld [vmem:[#allocation7 + $0x14] sm:$0xf]
        %v441 = vld [vmem:[#allocation7 + $0x18] sm:$0xf]
        %v442 = vld [vmem:[#allocation7 + $0x1c] sm:$0xf]
        %v443 = vld [vmem:[#allocation7 + $0x20] sm:$0xf]
        %v444 = vld [vmem:[#allocation7 + $0x24] sm:$0xf]
        %v445 = vld [vmem:[#allocation7 + $0x28] sm:$0xf]
        %v446 = vld [vmem:[#allocation7 + $0x2c] sm:$0xf]
        %v447 = vld [vmem:[#allocation7 + $0x30] sm:$0xf]
        %v448 = vld [vmem:[#allocation7 + $0x34] sm:$0xf]
        %v449 = vld [vmem:[#allocation7 + $0x38] sm:$0xf]
        %v450 = vld [vmem:[#allocation7 + $0x3c] sm:$0xf]
        %v451 = vld [vmem:[%s4] sm:$0x1]
        %v453 = vperm.slane %v451, 0
        %v471 = vunpack.c.l.b16 %v435
        %v472 = vunpack.c.l.b16 %v436
        %v473 = vunpack.c.l.b16 %v437
        %v474 = vunpack.c.l.b16 %v438
        %v475 = vunpack.c.l.b16 %v439
        %v476 = vunpack.c.l.b16 %v440
        %v477 = vunpack.c.l.b16 %v441
        %v478 = vunpack.c.l.b16 %v442
        %v479 = vunpack.c.l.b16 %v443
        %v480 = vunpack.c.l.b16 %v444
        %v481 = vunpack.c.l.b16 %v445
        %v482 = vunpack.c.l.b16 %v446
        %v483 = vunpack.c.l.b16 %v447
        %v484 = vunpack.c.l.b16 %v448
        %v485 = vunpack.c.l.b16 %v449
        %v486 = vunpack.c.l.b16 %v450
        %v487 = vpack.c.b16 %v472, %v471
        %v488 = vpack.c.b16 %v474, %v473
        %v489 = vpack.c.b16 %v476, %v475
        %v490 = vpack.c.b16 %v478, %v477
        %v491 = vpack.c.b16 %v480, %v479
        %v492 = vpack.c.b16 %v482, %v481
        %v493 = vpack.c.b16 %v484, %v483
        %v494 = vpack.c.b16 %v486, %v485
        %503 = vmatpush.bf16.msra.mxu0 %v494
        %504 = vmatpush.bf16.msra.mxu0 %v493
        %505 = vmatpush.bf16.msra.mxu0 %v492
        %506 = vmatpush.bf16.msra.mxu0 %v491
        %507 = vmatpush.bf16.msra.mxu0 %v490
        %508 = vmatpush.bf16.msra.mxu0 %v489
        %509 = vmatpush.bf16.msra.mxu0 %v488
        %510 = vmatpush.bf16.msra.mxu0 %v487
        %511 = vmatmul.bf16.gmra.mxu0 %v434
        %v512 = vpop.f32.mrf.mxu0
        %v513 = vadd.f32 %v453, %v512
        %v514 = vpop.f32.mrf.mxu0
        %v515 = vadd.f32 %v453, %v514
        %516 = vdwg.mxu0
        %v517 = vmax.f32 %v513, 0.0
        %v518 = vmax.f32 %v515, 0.0
        %v519 = vpack.c.bf16 %v518, %v517
        %v520 = vld [vmem:[#allocation8] sm:$0xf]
        %v521 = vld [vmem:[#allocation8 + $0x4] sm:$0xf]
        %v522 = vld [vmem:[#allocation8 + $0x8] sm:$0xf]
        %v523 = vld [vmem:[#allocation8 + $0xc] sm:$0xf]
        %v524 = vld [vmem:[#allocation8 + $0x10] sm:$0xf]
        %v525 = vld [vmem:[#allocation8 + $0x14] sm:$0xf]
        %v526 = vld [vmem:[#allocation8 + $0x18] sm:$0xf]
        %v527 = vld [vmem:[#allocation8 + $0x1c] sm:$0xf]
        %v528 = vld [vmem:[#allocation8 + $0x20] sm:$0xf]
        %v529 = vld [vmem:[#allocation8 + $0x24] sm:$0xf]
        %v530 = vld [vmem:[#allocation8 + $0x28] sm:$0xf]
        %v531 = vld [vmem:[#allocation8 + $0x2c] sm:$0xf]
        %v532 = vld [vmem:[#allocation8 + $0x30] sm:$0xf]
        %v533 = vld [vmem:[#allocation8 + $0x34] sm:$0xf]
        %v534 = vld [vmem:[#allocation8 + $0x38] sm:$0xf]
        %v535 = vld [vmem:[#allocation8 + $0x3c] sm:$0xf]
        %v552 = vunpack.c.l.b16 %v520
        %v553 = vunpack.c.l.b16 %v521
        %v554 = vunpack.c.l.b16 %v522
        %v555 = vunpack.c.l.b16 %v523
        %v556 = vunpack.c.l.b16 %v524
        %v557 = vunpack.c.l.b16 %v525
        %v558 = vunpack.c.l.b16 %v526
        %v559 = vunpack.c.l.b16 %v527
        %v560 = vunpack.c.l.b16 %v528
        %v561 = vunpack.c.l.b16 %v529
        %v562 = vunpack.c.l.b16 %v530
        %v563 = vunpack.c.l.b16 %v531
        %v564 = vunpack.c.l.b16 %v532
        %v565 = vunpack.c.l.b16 %v533
        %v566 = vunpack.c.l.b16 %v534
        %v567 = vunpack.c.l.b16 %v535
        %v568 = vpack.c.b16 %v553, %v552
        %v569 = vpack.c.b16 %v555, %v554
        %v570 = vpack.c.b16 %v557, %v556
        %v571 = vpack.c.b16 %v559, %v558
        %v572 = vpack.c.b16 %v561, %v560
        %v573 = vpack.c.b16 %v563, %v562
        %v574 = vpack.c.b16 %v565, %v564
        %v575 = vpack.c.b16 %v567, %v566
        %584 = vmatpush.bf16.msra.mxu0 %v575
        %585 = vmatpush.bf16.msra.mxu0 %v574
        %586 = vmatpush.bf16.msra.mxu0 %v573
        %587 = vmatpush.bf16.msra.mxu0 %v572
        %588 = vmatpush.bf16.msra.mxu0 %v571
        %589 = vmatpush.bf16.msra.mxu0 %v570
        %590 = vmatpush.bf16.msra.mxu0 %v569
        %591 = vmatpush.bf16.msra.mxu0 %v568
        %592 = vmatmul.bf16.gmra.mxu0 %v519
        %v593 = vpop.f32.mrf.mxu0
        %v594 = vadd.f32 0.0, %v593
        %v595 = vpop.f32.mrf.mxu0
        %v596 = vadd.f32 0.0, %v595
        %597 = vdwg.mxu0
        %v598 = vmul.f32 %v517, %v517
        %v599 = vmul.f32 %v518, %v518
        %600 = vadd.xlane.f32.xlu0 %v598
        %v601 = vpop.xlane.xlu0 %600
        %602 = vadd.xlane.f32.xlu0 %v599
        %v603 = vpop.xlane.xlu0 %602
        %v604 = vmax.f32 %v601, 1e-24
        %v605 = vmax.f32 %v603, 1e-24
        %v606 = vrsqrt.pop %v604
        %v607 = vmul.f32 %v606, %v604
        %v608 = vmul.f32 %v607, %v606
        %v609 = vmul.f32 0.5, %v608
        %v610 = vsub.f32 1.5, %v609
        %v611 = vmul.f32 %v606, %v610
        %vm612 = vweird.f32 %v604
        %vm613 = vweird.f32 %v606
        %vm614 = vmor %vm612, %vm613
        %v615 = vsel %vm614, %v606, %v611
        %v616 = vrsqrt.pop %v605
        %v617 = vmul.f32 %v616, %v605
        %v618 = vmul.f32 %v617, %v616
        %v619 = vmul.f32 0.5, %v618
        %v620 = vsub.f32 1.5, %v619
        %v621 = vmul.f32 %v616, %v620
        %vm622 = vweird.f32 %v605
        %vm623 = vweird.f32 %v616
        %vm624 = vmor %vm622, %vm623
        %v625 = vsel %vm624, %v616, %v621
        %v626 = vmul.f32 %v517, %v615
        %v627 = vmul.f32 %v518, %v625
        %v628 = vpack.c.bf16 %v626, %v626
        %v629 = vpack.c.bf16 %v627, %v627
        %630 = vst [vmem:[%s379] sm:$0xf] %v628
        %631 = vst [vmem:[%s379 + $0x4] sm:$0xf] %v629
        %v632 = vmul.f32 %v594, %v615
        %v633 = vmul.f32 %v596, %v625
        %v634 = vld [vmem:[%s6] sm:$0x1]
        %v636 = vperm.slane %v634, 0
        %v638 = vadd.f32 %v632, %v636
        %v639 = vadd.f32 %v633, %v636
        %v640 = vpack.c.bf16 %v638, %v638
        %v641 = vpack.c.bf16 %v639, %v639
        %642 = vst [vmem:[%s386] sm:$0xf] %v640
        %643 = vst [vmem:[%s386 + $0x4] sm:$0xf] %v641
        %s644 = sand.u32 %s191, 1
        %s645 = scalar_lea.sflag [#allocation4], %s644
        %s646 = sand.u32 %s191, 1
        %s647 = smul.addr %s646, 8
        %s648 = scalar_lea.vmem [#allocation10], %s647
        %s649 = sand.u32 %s217, 1
        %s650 = scalar_lea.sflag [#allocation12], %s649
        %s651 = sand.u32 %s217, 1
        %s652 = smul.addr %s651, 8
        %s653 = scalar_lea.vmem [#allocation11], %s652
        // Predicated region
        $region65: #{tpu_custom_call.1} parent=47 // pred_check
          %p654 = pneg %p201
        $region66: #{tpu_custom_call.1} parent=47 // pred_check_branch
          %656 = sbr.rel (%p654) target = $region68
        $region67: #{tpu_custom_call.1} parent=47 // pred_region
          %s657 = smul.u32 2, %s31
          %659 = vsyncadd %s645, 0
          %s660 = smul.addr %s657, 4
          %s661 = scalar_lea.hbm %s7, %s660
          %s662 = sshll.u32 %s648, 4
          %s663 = int_to_ptr.vmem [resolvable:$true] %s662
          %s664 = sshll.u32 %s661, 4
          %s665 = int_to_ptr.hbm [resolvable:$true] %s664
          %670 = dma.vmem_to_hbm [thread:$0]  %s663, 128, %s665, %s645, 64, 64, 4
        $region68: #{tpu_custom_call.1} parent=47 // pred_fallthru
          _
        // Predicated region
        $region69: #{tpu_custom_call.1} parent=47 // pred_check
          %p671 = pneg %p227
        $region70: #{tpu_custom_call.1} parent=47 // pred_check_branch
          %673 = sbr.rel (%p671) target = $region72
        $region71: #{tpu_custom_call.1} parent=47 // pred_region
          %s674 = smul.u32 2, %s31
          %676 = vsyncadd %s650, 0
          %s677 = smul.addr %s674, 4
          %s678 = scalar_lea.hbm %s8, %s677
          %s679 = sshll.u32 %s653, 4
          %s680 = int_to_ptr.vmem [resolvable:$true] %s679
          %s681 = sshll.u32 %s678, 4
          %s682 = int_to_ptr.hbm [resolvable:$true] %s681
          %687 = dma.vmem_to_hbm [thread:$0]  %s680, 128, %s682, %s650, 64, 64, 4
        $region72: #{tpu_custom_call.1} parent=47 // pred_fallthru
          _
      $region48: #{tpu_custom_call.1} parent=5 // pred_fallthru
        _
      %p688 = scmp.le.s32.totalorder 2, %s26
      // Predicated region
      $region73: #{tpu_custom_call.1} parent=5 // pred_check
        %p689 = pneg %p688
      $region74: #{tpu_custom_call.1} parent=5 // pred_check_branch
        %691 = sbr.rel (%p689) target = $region76
      $region75: #{tpu_custom_call.1} parent=5 // pred_region
        %s692 = ssub.s32 %s26, 2
        // Predicated region
        $region77: #{tpu_custom_call.1} parent=75 // pred_check
          %p693 = pneg %p207
        $region78: #{tpu_custom_call.1} parent=75 // pred_check_branch
          %695 = sbr.rel (%p693) target = $region80
        $region79: #{tpu_custom_call.1} parent=75 // pred_region
          %s696 = sand.u32 %s192, 1
          %s697 = scalar_lea.sflag [#allocation4], %s696
          %s698 = sand.u32 %s192, 1
          %s699 = smul.addr %s698, 8
          %s700 = scalar_lea.vmem [#allocation10], %s699
          %702 = dma.done %s697, 128
        $region80: #{tpu_custom_call.1} parent=75 // pred_fallthru
          _
        // Predicated region
        $region81: #{tpu_custom_call.1} parent=75 // pred_check
          %p703 = pneg %p233
        $region82: #{tpu_custom_call.1} parent=75 // pred_check_branch
          %705 = sbr.rel (%p703) target = $region84
        $region83: #{tpu_custom_call.1} parent=75 // pred_region
          %s706 = sand.u32 %s218, 1
          %s707 = scalar_lea.sflag [#allocation12], %s706
          %s708 = sand.u32 %s218, 1
          %s709 = smul.addr %s708, 8
          %s710 = scalar_lea.vmem [#allocation11], %s709
          %712 = dma.done %s707, 128
        $region84: #{tpu_custom_call.1} parent=75 // pred_fallthru
          _
      $region76: #{tpu_custom_call.1} parent=5 // pred_fallthru
        _
    $region6: #{tpu_custom_call.1} parent=1 // loop_footer
      %s30 = sadd.s32 1, %s26
    $region7: #{tpu_custom_call.1} parent=1 // loop_footer_branch
      %25 = sbr.rel target = $region3
    $region8: #{tpu_custom_call.1} parent=1 // loop_exit
      _
    %713 = vsyncpa [#allocation3], 1
    %s714 = scalar_lea.sflag [#allocation3], 1
    %715 = vsyncpa %s714, 1
    %716 = vsyncpa [#allocation6], 1
    %717 = vsyncpa [#allocation9], 1
    %718 = vsyncpa [#allocation4], 1
    %s719 = scalar_lea.sflag [#allocation4], 1
    %720 = vsyncpa %s719, 1
    %721 = vsyncpa [#allocation12], 1
    %s722 = scalar_lea.sflag [#allocation12], 1
    %723 = vsyncpa %s722, 1

</llo_original>
